<compile_context>
chip_gen: v5e
topology: v5e:2x2
jax: 0.10.0
libtpu: 0.0.40
codegen_flags: <defaults>
</compile_context>

<pallas_src>
import jax
import jax.numpy as jnp
from jax.experimental import pallas as pl
from jax.experimental.pallas import tpu as pltpu

MASK_P = 0.2
NUM_UNITS = 9
SIZE = 2
DIM_HIDDEN = SIZE * 2                 # per-unit encoder hidden dim = 4
ENC_OUT = NUM_UNITS * DIM_HIDDEN      # 36  (== NUM_UNITS * 4 == ContextNet dim_hidden)
CTX_HIDDEN = NUM_UNITS * 4            # 36
OUT_SLAB = 128                        # lane-dense packed output width
OUT_PAD = OUT_SLAB - (2 * ENC_OUT + 2 * NUM_UNITS)   # 128 - 90 = 38


def model_kernel(x12_ref, u_ref,
                 ew_ref, eb_ref,
                 cw1_ref, cb1_ref, cw2_ref, cb2_ref,
                 out_ref):
    B = u_ref.shape[0]

    x = x12_ref[...]                  # (2B, SIZE) -- x1 rows then x2 rows
    ew = ew_ref[...]                  # (SIZE, ENC_OUT)
    eb = eb_ref[...]                  # (1, ENC_OUT)

    # Encoder on the fused (2B, SIZE) batch.  Contraction dim is only 2, so use
    # VPU broadcast-FMAs instead of pushing a K=2 matmul through the MXU.
    y12 = jnp.tanh(x[:, 0:1] * ew[0:1, :] + x[:, 1:2] * ew[1:2, :] + eb)   # (2B, ENC_OUT)
    y1 = y12[:B]                      # encoder(x1)
    y2 = y12[B:]                      # encoder(x2)

    # ContextNet(y1): 2-layer MLP + softmax over units.
    h = jnp.maximum(
        jnp.dot(y1, cw1_ref[...], preferred_element_type=jnp.float32) + cb1_ref[...], 0.0)
    logits = jnp.dot(h, cw2_ref[...], preferred_element_type=jnp.float32) + cb2_ref[...]
    m = jnp.max(logits, axis=-1, keepdims=True)
    e = jnp.exp(logits - m)
    w = e / jnp.sum(e, axis=-1, keepdims=True)

    # Stochastic unit mask: keep with probability (1 - MASK_P).
    mask = (u_ref[...] >= MASK_P).astype(jnp.float32)

    # Single unmasked 128-lane store: [y1 | y2 | w | mask | pad].
    pad = jnp.zeros((B, OUT_PAD), jnp.float32)
    out_ref[...] = jnp.concatenate([y1, y2, w, mask, pad], axis=-1)


def init_params(key):
    k = jax.random.split(key, 3)
    scale = 0.1
    return {
        "enc_w": (scale * jax.random.normal(k[0], (SIZE, ENC_OUT))).astype(jnp.float32),
        "enc_b": jnp.zeros((1, ENC_OUT), jnp.float32),
        "ctx_w1": (scale * jax.random.normal(k[1], (ENC_OUT, CTX_HIDDEN))).astype(jnp.float32),
        "ctx_b1": jnp.zeros((1, CTX_HIDDEN), jnp.float32),
        "ctx_w2": (scale * jax.random.normal(k[2], (CTX_HIDDEN, NUM_UNITS))).astype(jnp.float32),
        "ctx_b2": jnp.zeros((1, NUM_UNITS), jnp.float32),
        # temperature exists in the PyTorch module but is unused in forward().
        "temperature": jnp.ones((NUM_UNITS,), jnp.float32),
    }


def model_forward(params, x1, x2, mask_key):
    B = x1.shape[0]
    # Fuse the two encoder passes: one stacked (2B, SIZE) input.
    x12 = jnp.concatenate([x1, x2], axis=0)
    # Randomness for the Bernoulli mask is generated host-side and thresholded in-kernel.
    uniforms = jax.random.uniform(mask_key, (B, NUM_UNITS), dtype=jnp.float32)

    vmem = pl.BlockSpec(memory_space=pltpu.MemorySpace.VMEM)

    out = pl.pallas_call(
        model_kernel,
        out_shape=jax.ShapeDtypeStruct((B, OUT_SLAB), jnp.float32),
        in_specs=[vmem] * 8,
        out_specs=vmem,
    )(x12, uniforms,
      params["enc_w"], params["enc_b"],
      params["ctx_w1"], params["ctx_b1"],
      params["ctx_w2"], params["ctx_b2"])

    y1 = out[:, 0:ENC_OUT].reshape(B, NUM_UNITS, DIM_HIDDEN)
    y2 = out[:, ENC_OUT:2 * ENC_OUT].reshape(B, NUM_UNITS, DIM_HIDDEN)
    w = out[:, 2 * ENC_OUT:2 * ENC_OUT + NUM_UNITS]
    mask = out[:, 2 * ENC_OUT + NUM_UNITS:2 * ENC_OUT + 2 * NUM_UNITS]
    return (y1, w), y2, mask


if __name__ == "__main__":
    key = jax.random.PRNGKey(0)
    pkey, k1, k2, kmask = jax.random.split(key, 4)

    B = 8
    params = init_params(pkey)
    x1 = jax.random.normal(k1, (B, SIZE), dtype=jnp.float32)
    x2 = jax.random.normal(k2, (B, SIZE), dtype=jnp.float32)

    (y1, w), y2, mask = model_forward(params, x1, x2, kmask)
    jax.block_until_ready((y1, w, y2, mask))

    assert y1.shape == (B, NUM_UNITS, DIM_HIDDEN)
    assert y2.shape == (B, NUM_UNITS, DIM_HIDDEN)
    assert w.shape == (B, NUM_UNITS)
    assert mask.shape == (B, NUM_UNITS)
    # softmax rows sum to 1
    assert bool(jnp.allclose(jnp.sum(w, axis=-1), 1.0, atol=1e-5))
    # mask entries are 0/1
    assert bool(jnp.all((mask == 0.0) | (mask == 1.0)))

    # Reference check of the encoder/context math in plain JAX.
    y1_ref = jnp.tanh(x1 @ params["enc_w"] + params["enc_b"])
    y2_ref = jnp.tanh(x2 @ params["enc_w"] + params["enc_b"])
    h_ref = jnp.maximum(y1_ref @ params["ctx_w1"] + params["ctx_b1"], 0.0)
    w_ref = jax.nn.softmax(h_ref @ params["ctx_w2"] + params["ctx_b2"], axis=-1)
    assert bool(jnp.allclose(y1.reshape(B, -1), y1_ref, atol=1e-5))
    assert bool(jnp.allclose(y2.reshape(B, -1), y2_ref, atol=1e-5))
    assert bool(jnp.allclose(w, w_ref, atol=1e-5))

    print("KERNEL_OK")
</pallas_src>

<mosaic_0001>
module attributes {stable_mosaic.version = 11 : i64} {
  func.func @model_kernel(%arg0: memref<16x2xf32, #tpu.memory_space<vmem>>, %arg1: memref<8x9xf32, #tpu.memory_space<vmem>>, %arg2: memref<2x36xf32, #tpu.memory_space<vmem>>, %arg3: memref<1x36xf32, #tpu.memory_space<vmem>>, %arg4: memref<36x36xf32, #tpu.memory_space<vmem>>, %arg5: memref<1x36xf32, #tpu.memory_space<vmem>>, %arg6: memref<36x9xf32, #tpu.memory_space<vmem>>, %arg7: memref<1x9xf32, #tpu.memory_space<vmem>>, %arg8: memref<8x128xf32, #tpu.memory_space<vmem>>) attributes {dimension_semantics = [], scalar_prefetch = 0 : i64, scratch_operands = 0 : i64, tpu.core_type = #tpu.core_type<tc>} {
    %c0 = arith.constant 0 : index
    %c0_0 = arith.constant 0 : index
    %0 = vector.load %arg0[%c0, %c0_0] : memref<16x2xf32, #tpu.memory_space<vmem>>, vector<16x2xf32>
    %c0_1 = arith.constant 0 : index
    %c0_2 = arith.constant 0 : index
    %1 = vector.load %arg2[%c0_1, %c0_2] : memref<2x36xf32, #tpu.memory_space<vmem>>, vector<2x36xf32>
    %c0_3 = arith.constant 0 : index
    %c0_4 = arith.constant 0 : index
    %2 = vector.load %arg3[%c0_3, %c0_4] : memref<1x36xf32, #tpu.memory_space<vmem>>, vector<1x36xf32>
    %3 = vector.extract_strided_slice %0 {offsets = [0, 0], sizes = [16, 1], strides = [1, 1]} : vector<16x2xf32> to vector<16x1xf32>
    %4 = vector.extract_strided_slice %1 {offsets = [0, 0], sizes = [1, 36], strides = [1, 1]} : vector<2x36xf32> to vector<1x36xf32>
    %5 = vector.broadcast %3 : vector<16x1xf32> to vector<16x36xf32>
    %6 = vector.broadcast %4 : vector<1x36xf32> to vector<16x36xf32>
    %7 = arith.mulf %5, %6 : vector<16x36xf32>
    %8 = vector.extract_strided_slice %0 {offsets = [0, 1], sizes = [16, 1], strides = [1, 1]} : vector<16x2xf32> to vector<16x1xf32>
    %9 = vector.extract_strided_slice %1 {offsets = [1, 0], sizes = [1, 36], strides = [1, 1]} : vector<2x36xf32> to vector<1x36xf32>
    %10 = vector.broadcast %8 : vector<16x1xf32> to vector<16x36xf32>
    %11 = vector.broadcast %9 : vector<1x36xf32> to vector<16x36xf32>
    %12 = arith.mulf %10, %11 : vector<16x36xf32>
    %13 = arith.addf %7, %12 : vector<16x36xf32>
    %14 = vector.broadcast %2 : vector<1x36xf32> to vector<16x36xf32>
    %15 = arith.addf %13, %14 : vector<16x36xf32>
    %16 = math.tanh %15 : vector<16x36xf32>
    %17 = vector.extract_strided_slice %16 {offsets = [0, 0], sizes = [8, 36], strides = [1, 1]} : vector<16x36xf32> to vector<8x36xf32>
    %18 = vector.extract_strided_slice %16 {offsets = [8, 0], sizes = [8, 36], strides = [1, 1]} : vector<16x36xf32> to vector<8x36xf32>
    %c0_5 = arith.constant 0 : index
    %c0_6 = arith.constant 0 : index
    %19 = vector.load %arg4[%c0_5, %c0_6] : memref<36x36xf32, #tpu.memory_space<vmem>>, vector<36x36xf32>
    %cst = arith.constant dense<0.000000e+00> : vector<8x36xf32>
    %20 = tpu.matmul %17, %19, %cst {dimension_numbers = #tpu.dot_dimension_numbers<[1], [0], [0], [1], [0, 0, 1, 1], [], []>} : vector<8x36xf32>, vector<36x36xf32>, vector<8x36xf32> -> vector<8x36xf32>
    %c0_7 = arith.constant 0 : index
    %c0_8 = arith.constant 0 : index
    %21 = vector.load %arg5[%c0_7, %c0_8] : memref<1x36xf32, #tpu.memory_space<vmem>>, vector<1x36xf32>
    %22 = vector.broadcast %21 : vector<1x36xf32> to vector<8x36xf32>
    %23 = arith.addf %20, %22 : vector<8x36xf32>
    %cst_9 = arith.constant 0.000000e+00 : f32
    %24 = vector.broadcast %cst_9 : f32 to vector<8x36xf32>
    %25 = arith.maximumf %23, %24 : vector<8x36xf32>
    %c0_10 = arith.constant 0 : index
    %c0_11 = arith.constant 0 : index
    %26 = vector.load %arg6[%c0_10, %c0_11] : memref<36x9xf32, #tpu.memory_space<vmem>>, vector<36x9xf32>
    %cst_12 = arith.constant dense<0.000000e+00> : vector<8x9xf32>
    %27 = tpu.matmul %25, %26, %cst_12 {dimension_numbers = #tpu.dot_dimension_numbers<[1], [0], [0], [1], [0, 0, 1, 1], [], []>} : vector<8x36xf32>, vector<36x9xf32>, vector<8x9xf32> -> vector<8x9xf32>
    %c0_13 = arith.constant 0 : index
    %c0_14 = arith.constant 0 : index
    %28 = vector.load %arg7[%c0_13, %c0_14] : memref<1x9xf32, #tpu.memory_space<vmem>>, vector<1x9xf32>
    %29 = vector.broadcast %28 : vector<1x9xf32> to vector<8x9xf32>
    %30 = arith.addf %27, %29 : vector<8x9xf32>
    %cst_15 = arith.constant dense<0xFF800000> : vector<8xf32>
    %31 = vector.multi_reduction <maximumf>, %30, %cst_15 [1] : vector<8x9xf32> to vector<8xf32>
    %32 = vector.shape_cast %31 : vector<8xf32> to vector<8x1xf32>
    %33 = vector.broadcast %32 : vector<8x1xf32> to vector<8x9xf32>
    %34 = arith.subf %30, %33 : vector<8x9xf32>
    %35 = math.exp %34 : vector<8x9xf32>
    %cst_16 = arith.constant dense<0.000000e+00> : vector<8xf32>
    %36 = vector.multi_reduction <add>, %35, %cst_16 [1] : vector<8x9xf32> to vector<8xf32>
    %37 = vector.shape_cast %36 : vector<8xf32> to vector<8x1xf32>
    %38 = vector.broadcast %37 : vector<8x1xf32> to vector<8x9xf32>
    %39 = arith.divf %35, %38 : vector<8x9xf32>
    %c0_17 = arith.constant 0 : index
    %c0_18 = arith.constant 0 : index
    %40 = vector.load %arg1[%c0_17, %c0_18] : memref<8x9xf32, #tpu.memory_space<vmem>>, vector<8x9xf32>
    %cst_19 = arith.constant 2.000000e-01 : f32
    %41 = vector.broadcast %cst_19 : f32 to vector<8x9xf32>
    %42 = arith.cmpf oge, %40, %41 : vector<8x9xf32>
    %43 = arith.extui %42 : vector<8x9xi1> to vector<8x9xi32>
    %44 = arith.sitofp %43 : vector<8x9xi32> to vector<8x9xf32>
    %cst_20 = arith.constant 0.000000e+00 : f32
    %45 = vector.broadcast %cst_20 : f32 to vector<8x38xf32>
    %46 = tpu.concatenate %17, %18, %39, %44, %45 in 1 : vector<8x36xf32>, vector<8x36xf32>, vector<8x9xf32>, vector<8x9xf32>, vector<8x38xf32> -> vector<8x128xf32>
    %c0_21 = arith.constant 0 : index
    %c0_22 = arith.constant 0 : index
    %47 = vector.load %arg8[%c0_21, %c0_22] : memref<8x128xf32, #tpu.memory_space<vmem>>, vector<8x128xf32>
    tpu.vector_store %arg8[%c0_21, %c0_22], %46 {strides = array<i32>} : memref<8x128xf32, #tpu.memory_space<vmem>>, vector<8x128xf32>,
    return
  }
}

</mosaic_0001>

<llo_original>
// kernel: tpu_custom_call.1
$region0: #{tpu_custom_call.1}
  #allocation0 [shape = 'u32[]', space=smem, size = 0x4, offset = 0x4, fixed_abs, tag = 'smem constant byte address 0x4 - core index']
  #allocation1 [shape = 'u32[72,128]{1,0:T(1,128)}', space=vmem, size = 0x9000, scoped, tag = 'internal scratch']
  %s0 = inlined_call_operand.vmem [shape: f32[16,2], index: 0, kind: input, shape index: {}]
  %s1 = inlined_call_operand.vmem [shape: f32[8,9], index: 1, kind: input, shape index: {}]
  %s2 = inlined_call_operand.vmem [shape: f32[2,36], index: 2, kind: input, shape index: {}]
  %s3 = inlined_call_operand.vmem [shape: f32[1,36], index: 3, kind: input, shape index: {}]
  %s4 = inlined_call_operand.vmem [shape: f32[36,36], index: 4, kind: input, shape index: {}]
  %s5 = inlined_call_operand.vmem [shape: f32[1,36], index: 5, kind: input, shape index: {}]
  %s6 = inlined_call_operand.vmem [shape: f32[36,9], index: 6, kind: input, shape index: {}]
  %s7 = inlined_call_operand.vmem [shape: f32[1,9], index: 7, kind: input, shape index: {}]
  %s8 = inlined_call_operand.hbm [shape: f32[8,128], index: 8, kind: output, shape index: {}]
  %s9 = sld [smem:[#allocation0]]
  $region42: #{tpu_custom_call.1} parent=0
    _
  %s11 = ssub.s32 1, %s9
  %s12 = scalar_select 0, %s11, %s9
  $region1: #{tpu_custom_call.1} parent=0
    #allocation2 [shape = 'u8[4096]{0}', space=vmem, size = 0x1000, scoped, tag = 'output window, operand 0, single buffered']
    #allocation3 [shape = 's32[1]{0}', space=sflag, size = 0x4, scoped, tag = 'scoped memory for tpu_custom_call.1']
    %13 = vsyncpa [#allocation3], 0
    // Predicated region
    $region2: #{tpu_custom_call.1} parent=1 // pred_check
      _
    $region3: #{tpu_custom_call.1} parent=1 // pred_check_branch
      %15 = sbr.rel (0) target = $region5
    $region4: #{tpu_custom_call.1} parent=1 // pred_region
      _
    $region5: #{tpu_custom_call.1} parent=1 // pred_fallthru
      _
    // Predicated region
    $region6: #{tpu_custom_call.1} parent=1 // pred_check
      _
    $region7: #{tpu_custom_call.1} parent=1 // pred_check_branch
      %17 = sbr.rel (0) target = $region9
    $region8: #{tpu_custom_call.1} parent=1 // pred_region
      _
    $region9: #{tpu_custom_call.1} parent=1 // pred_fallthru
      _
    // Predicated region
    $region10: #{tpu_custom_call.1} parent=1 // pred_check
      _
    $region11: #{tpu_custom_call.1} parent=1 // pred_check_branch
      %19 = sbr.rel (0) target = $region13
    $region12: #{tpu_custom_call.1} parent=1 // pred_region
      _
    $region13: #{tpu_custom_call.1} parent=1 // pred_fallthru
      _
    // Predicated region
    $region14: #{tpu_custom_call.1} parent=1 // pred_check
      _
    $region15: #{tpu_custom_call.1} parent=1 // pred_check_branch
      %21 = sbr.rel (0) target = $region17
    $region16: #{tpu_custom_call.1} parent=1 // pred_region
      _
    $region17: #{tpu_custom_call.1} parent=1 // pred_fallthru
      _
    // Predicated region
    $region18: #{tpu_custom_call.1} parent=1 // pred_check
      _
    $region19: #{tpu_custom_call.1} parent=1 // pred_check_branch
      %23 = sbr.rel (0) target = $region21
    $region20: #{tpu_custom_call.1} parent=1 // pred_region
      _
    $region21: #{tpu_custom_call.1} parent=1 // pred_fallthru
      _
    // Predicated region
    $region22: #{tpu_custom_call.1} parent=1 // pred_check
      _
    $region23: #{tpu_custom_call.1} parent=1 // pred_check_branch
      %25 = sbr.rel (0) target = $region25
    $region24: #{tpu_custom_call.1} parent=1 // pred_region
      _
    $region25: #{tpu_custom_call.1} parent=1 // pred_fallthru
      _
    // Predicated region
    $region26: #{tpu_custom_call.1} parent=1 // pred_check
      _
    $region27: #{tpu_custom_call.1} parent=1 // pred_check_branch
      %27 = sbr.rel (0) target = $region29
    $region28: #{tpu_custom_call.1} parent=1 // pred_region
      _
    $region29: #{tpu_custom_call.1} parent=1 // pred_fallthru
      _
    // Predicated region
    $region30: #{tpu_custom_call.1} parent=1 // pred_check
      _
    $region31: #{tpu_custom_call.1} parent=1 // pred_check_branch
      %29 = sbr.rel (0) target = $region33
    $region32: #{tpu_custom_call.1} parent=1 // pred_region
      _
    $region33: #{tpu_custom_call.1} parent=1 // pred_fallthru
      _
    %v30 = vld [vmem:[%s0] sm:$0xff]
    %v31 = vld [vmem:[%s0 + $0x8] sm:$0xff]
    %v32 = vld [vmem:[%s2] sm:$0x3]
    %v33 = vld [vmem:[%s3] sm:$0x1]
    %35 = vset.pattern.permute.xlu0 0
    %36 = vperm.xlu0 %35, %v30
    %v37 = vpop.permute.xlu0 %36
    %40 = vset.pattern.permute.xlu0 0
    %41 = vperm.xlu0 %40, %v31
    %v42 = vpop.permute.xlu0 %41
    %v44 = vperm.slane %v32, 0
    %v45 = vmul.f32 %v37, %v44
    %v46 = vmul.f32 %v42, %v44
    %47 = vset.pattern.permute.xlu0 1
    %48 = vperm.xlu0 %47, %v30
    %v49 = vpop.permute.xlu0 %48
    %51 = vset.pattern.permute.xlu0 1
    %52 = vperm.xlu0 %51, %v31
    %v53 = vpop.permute.xlu0 %52
    %v55 = vperm.slane %v32, 1
    %v56 = vmul.f32 %v49, %v55
    %v57 = vmul.f32 %v53, %v55
    %v58 = vadd.f32 %v45, %v56
    %v59 = vadd.f32 %v46, %v57
    %v61 = vperm.slane %v33, 0
    %v63 = vadd.f32 %v58, %v61
    %v64 = vadd.f32 %v59, %v61
    %v65 = vtanh.pop %v63
    %v66 = vtanh.pop %v64
    %v67 = vld [vmem:[%s4] sm:$0xff]
    %v68 = vld [vmem:[%s4 + $0x8] sm:$0xff]
    %v69 = vld [vmem:[%s4 + $0x10] sm:$0xff]
    %v70 = vld [vmem:[%s4 + $0x18] sm:$0xff]
    %v71 = vld [vmem:[%s4 + $0x20] sm:$0xf]
    %v72 = vld [vmem:[%s5] sm:$0x1]
    %v74 = vperm.slane %v72, 0
    %vm76 = vcmask 293888
    %v78 = vsel %vm76, %v65, 0
    %vm80 = vcmask 1043456
    %v82 = vsel %vm80, %v71, 0
    %84 = vmatpush.msra.mxu0 0.0
    %85 = vmatpush.msra.mxu0 0.0
    %86 = vmatpush.msra.mxu0 0.0
    %87 = vmatpush.msra.mxu0 0.0
    %88 = vmatpush.msra.mxu0 0.0
    %89 = vmatpush.msra.mxu0 0.0
    %90 = vmatpush.msra.mxu0 0.0
    %91 = vmatpush.msra.mxu0 0.0
    %92 = vmatpush.msra.mxu0 0.0
    %93 = vmatpush.msra.mxu0 0.0
    %94 = vmatpush.msra.mxu0 0.0
    %95 = vmatpush.msra.mxu0 %v82
    %96 = vmatpush.msra.mxu0 %v70
    %97 = vmatpush.msra.mxu0 %v69
    %98 = vmatpush.msra.mxu0 %v68
    %99 = vmatpush.msra.mxu0 %v67
    %100 = vmatmul.f32.gmra.mxu0 %v78
    %v101 = vpop.f32.mrf.mxu0
    %v102 = vadd.f32 %v74, %v101
    %103 = vdwg.mxu0
    %v104 = vmax.f32 %v102, 0.0
    %v105 = vld [vmem:[%s6] sm:$0xff]
    %v106 = vld [vmem:[%s6 + $0x8] sm:$0xff]
    %v107 = vld [vmem:[%s6 + $0x10] sm:$0xff]
    %v108 = vld [vmem:[%s6 + $0x18] sm:$0xff]
    %v109 = vld [vmem:[%s6 + $0x20] sm:$0xf]
    %v110 = vld [vmem:[%s7] sm:$0x1]
    %v112 = vperm.slane %v110, 0
    %v115 = vsel %vm76, %v104, 0
    %v118 = vsel %vm80, %v109, 0
    %120 = vmatpush.msra.mxu0 0.0
    %121 = vmatpush.msra.mxu0 0.0
    %122 = vmatpush.msra.mxu0 0.0
    %123 = vmatpush.msra.mxu0 0.0
    %124 = vmatpush.msra.mxu0 0.0
    %125 = vmatpush.msra.mxu0 0.0
    %126 = vmatpush.msra.mxu0 0.0
    %127 = vmatpush.msra.mxu0 0.0
    %128 = vmatpush.msra.mxu0 0.0
    %129 = vmatpush.msra.mxu0 0.0
    %130 = vmatpush.msra.mxu0 0.0
    %131 = vmatpush.msra.mxu0 %v118
    %132 = vmatpush.msra.mxu0 %v108
    %133 = vmatpush.msra.mxu0 %v107
    %134 = vmatpush.msra.mxu0 %v106
    %135 = vmatpush.msra.mxu0 %v105
    %136 = vmatmul.f32.gmra.mxu0 %v115
    %v137 = vpop.f32.mrf.mxu0
    %v138 = vadd.f32 %v112, %v137
    %139 = vdwg.mxu0
    %vm140 = vcmask 72704
    %v141 = vsel %vm140, %v138, -inf
    %142 = vmax.xlane.f32.xlu0 %v141
    %v143 = vpop.xlane.xlu0 %142
    %v144 = vsub.f32 %v138, %v143
    %v145 = vmul.f32 %v144, 1.442695
    %v146 = vpow.pop %v145
    %v147 = vsel %vm140, %v146, 0.0
    %148 = vadd.xlane.f32.xlu0 %v147
    %v149 = vpop.xlane.xlu0 %148
    %v150 = vrcp.pop %v149
    %v151 = vmul.f32 %v149, %v150
    %v152 = vsub.f32 1.0, %v151
    %v153 = vmul.f32 %v150, %v152
    %v154 = vadd.f32 %v150, %v153
    %vm155 = vweird.f32 %v149
    %vm156 = vweird.f32 %v150
    %vm157 = vmor %vm155, %vm156
    %v158 = vsel %vm157, %v150, %v154
    %v159 = vand.u32 2147483647, %v149
    %vm160 = vcmp.eq.f32.partialorder %v159, 8.507059e+37
    %v161 = vand.u32 %v149, 2147483648
    %v162 = vor.u32 1.1754944e-38, %v161
    %v163 = vsel %vm160, %v162, %v158
    %v164 = vmul.f32 %v146, %v163
    %v165 = vld [vmem:[%s1] sm:$0xff]
    %vm166 = vcmp.ge.f32.partialorder %v165, 0.2
    %v167 = vsel %vm166, 1, 0
    %v168 = vcvt.s32.f32 %v167
    %170 = vrot.lane.b32.xlu0 %v66, 36
    %v171 = vpop.permute.xlu0 %170
    %174 = vrot.lane.b32.xlu0 %v164, 72
    %v175 = vpop.permute.xlu0 %174
    %178 = vrot.lane.b32.xlu0 %v168, 81
    %v179 = vpop.permute.xlu0 %178
    %v181 = vsel %vm76, %v65, %v171
    %vm182 = vcmask 588800
    %v183 = vsel %vm182, %v181, %v175
    %vm184 = vcmask 662528
    %v185 = vsel %vm184, %v183, %v179
    %vm186 = vcmask 736256
    %v187 = vsel %vm186, %v185, 0.0
    %188 = vst [vmem:[#allocation2] sm:$0xff] %v187
    // Predicated region
    $region34: #{tpu_custom_call.1} parent=1 // pred_check
      _
    $region35: #{tpu_custom_call.1} parent=1 // pred_check_branch
      %190 = sbr.rel (0) target = $region37
    $region36: #{tpu_custom_call.1} parent=1 // pred_region
      %192 = vsyncadd [#allocation3], 0
      %s194 = sshll.u32 [#allocation2], 4
      %s195 = int_to_ptr.vmem [resolvable:$true] %s194
      %s196 = sshll.u32 %s8, 4
      %s197 = int_to_ptr.hbm [resolvable:$true] %s196
      %199 = dma.vmem_to_hbm [thread:$0]  %s195, 128, %s197, [#allocation3]
    $region37: #{tpu_custom_call.1} parent=1 // pred_fallthru
      _
    // Predicated region
    $region38: #{tpu_custom_call.1} parent=1 // pred_check
      _
    $region39: #{tpu_custom_call.1} parent=1 // pred_check_branch
      %201 = sbr.rel (0) target = $region41
    $region40: #{tpu_custom_call.1} parent=1 // pred_region
      %203 = dma.done [#allocation3], 128
    $region41: #{tpu_custom_call.1} parent=1 // pred_fallthru
      _
    %204 = vsyncpa [#allocation3], 1

</llo_original>
